<compile_context>
chip_gen: v6e
topology: v6e:2x2x1
jax: 0.10.0
libtpu: 0.0.40
codegen_flags: <defaults>
</compile_context>

<pallas_src>
import jax
import jax.numpy as jnp
from jax.experimental import pallas as pl
from jax.experimental.pallas import tpu as pltpu

_LANE = 128


def _build_kernel(scale, compute_dtype):
    """scale = 1/(N*B); compute_dtype = MXU operand dtype (f32 or bf16)."""

    def e_rule_kernel(yp_ref, p_ref, ypt_ref, invm_ref, out_ref, acc_ref):
        n = pl.program_id(1)

        @pl.when(n == 0)
        def _init():
            acc_ref[...] = jnp.zeros_like(acc_ref)

        # MXU operands in native (or bf16-upcast) dtype — never a full f32 copy
        # of the streamed P tile.
        p_tile = p_ref[...]                     # (tn, Npad) streamed P rows
        if p_tile.dtype != compute_dtype:       # int8 / fp8 storage -> bf16
            p_tile = p_tile.astype(compute_dtype)
        yp = yp_ref[...]                        # (B, Npad) resident y_pred
        if yp.dtype != compute_dtype:           # tiny (B, Npad) cast only
            yp = yp.astype(compute_dtype)

        # S[b, j] = sum_k y_pred[b, k] * P[row0 + j, k]   -> one MXU pass / tile
        s = jax.lax.dot_general(
            yp, p_tile,
            dimension_numbers=(((1,), (1,)), ((), ())),
            preferred_element_type=jnp.float32,
        )                                       # (B, tn) f32

        # diag term: y_pred[b, row0+j] * (1/M[row0+j]) * S[b, j]
        # (the divide was hoisted to a one-time O(N) reciprocal in the wrapper)
        acc_ref[...] += (ypt_ref[...].astype(jnp.float32) * invm_ref[...]) * s

        @pl.when(n == pl.num_programs(1) - 1)
        def _finalize():
            # Single cross-lane reduce + scale + lane-dense store, once / slice.
            total = jnp.sum(acc_ref[...]) * scale
            out_ref[...] = jnp.zeros(out_ref.shape, out_ref.dtype) + total

    return e_rule_kernel


def _auto_num_cores():
    # Only v7x has 2 TensorCores behind one Pallas device; on v5e/v6e a second
    # "parallel" slice only adds padding and an extra finalize/writeback.
    try:
        kind = jax.devices()[0].device_kind.lower()
    except Exception:
        return 1
    return 2 if ("v7" in kind or "7x" in kind) else 1


def _pick_row_tile(per_slice_rows, cap_rows):
    """Largest tile <= cap_rows that divides per_slice_rows; prefer multiples
    of 256 (fills the 2x256^2 MXU on v6e/v7x), else multiples of 128."""
    cap_rows = min(cap_rows, per_slice_rows)
    for step in (256, _LANE):
        t = (cap_rows // step) * step
        while t >= step:
            if per_slice_rows % t == 0:
                return t
            t -= step
    return per_slice_rows


def e_rule_loss(y_pred, y_true, P, M_raw, *, row_tile=None, num_cores=None):
    """E-rule loss. y_true is accepted for API parity but unused (as in PyTorch)."""
    del y_true
    y_pred = jnp.asarray(y_pred)
    P = jnp.asarray(P)
    B, N = y_pred.shape
    assert P.shape == (N, N), (P.shape, N)

    # Module semantics: M = max(M_raw, 1).  Fold the divide into a reciprocal
    # row vector once here (O(N) work — negligible vs the N*N read of P).
    M = jnp.maximum(jnp.asarray(M_raw, jnp.float32).reshape(-1), 1.0)
    inv_m = (1.0 / M).reshape(1, N)

    if num_cores is None:
        num_cores = _auto_num_cores()
    # Need at least one 128-row tile per parallel slice.
    if ((N + _LANE - 1) // _LANE) * _LANE < num_cores * _LANE:
        num_cores = 1
    pad_to = _LANE * num_cores
    Npad = ((N + pad_to - 1) // pad_to) * pad_to
    per_slice_rows = Npad // num_cores

    p_item = P.dtype.itemsize
    yp_item = y_pred.dtype.itemsize

    # MXU compute dtype: f32 only if P is stored f32; otherwise bf16 (int8/fp8
    # P storage is upcast to bf16 in-kernel right before the dot).
    compute_dtype = jnp.float32 if P.dtype == jnp.float32 else jnp.bfloat16

    # Per-buffer P budget ~12 MiB (DMA >= ~4 us even at 3.2 TB/s, so the fixed
    # ~0.35 us per-step overhead is <10%), shrunk if the resident y_pred block
    # is large so the total stays well inside v7x's 64 MiB/TC.
    resident_bytes = B * Npad * yp_item
    p_budget = min(12 * 1024 * 1024,
                   max(2 * 1024 * 1024,
                       (40 * 1024 * 1024 - 2 * resident_bytes) // 2))
    cap_rows = max(_LANE, (p_budget // max(1, Npad * p_item)) // _LANE * _LANE)
    if row_tile is not None:
        cap_rows = min(cap_rows, max(_LANE, (row_tile // _LANE) * _LANE))
    tn = _pick_row_tile(per_slice_rows, cap_rows)
    inner = per_slice_rows // tn

    # Zero-pad the node dim to Npad (exact: padded y_pred columns are zero, so
    # padded rows/cols of P contribute nothing).  No-op when already aligned.
    if Npad != N:
        P_in = jnp.pad(P, ((0, Npad - N), (0, Npad - N)))
        yp_in = jnp.pad(y_pred, ((0, 0), (0, Npad - N)))
        invm_in = jnp.pad(inv_m, ((0, 0), (0, Npad - N)))
    else:
        P_in, yp_in, invm_in = P, y_pred, inv_m

    # VMEM budget including in-kernel temporaries (matmul result, bf16 cast
    # copy) that the previous estimate missed.  Capped at 48 MiB so we never
    # ask for all of v7x's 64 MiB/TC.
    est_vmem = (2 * tn * Npad * p_item          # P double-buffer (dominant)
                + 2 * B * Npad * yp_item        # resident y_pred (worst case 2x)
                + B * Npad * 2                  # bf16 cast copy of resident y_pred
                + 2 * B * tn * yp_item          # y_pred column-tile stream
                + 2 * tn * 4                    # 1/M tile stream
                + B * tn * 4                    # accumulator scratch
                + 3 * B * tn * 4                # matmul result + elementwise temps
                + 2 * num_cores * 8 * 128 * 4)  # output blocks
    vmem_limit = int(min(48 * 1024 * 1024,
                         max(32 * 1024 * 1024, est_vmem + est_vmem // 4)))

    kernel = _build_kernel(1.0 / (float(N) * float(B)), compute_dtype)

    def make_call(resident_spec):
        return pl.pallas_call(
            kernel,
            grid_spec=pltpu.PrefetchScalarGridSpec(
                num_scalar_prefetch=0,
                grid=(num_cores, inner),
                in_specs=[
                    # resident y_pred for the contraction
                    resident_spec,
                    # streamed P row tiles
                    pl.BlockSpec((tn, Npad), lambda c, n: (c * inner + n, 0)),
                    # y_pred columns matching this row tile (diag product)
                    pl.BlockSpec((B, tn), lambda c, n: (0, c * inner + n)),
                    # 1/M columns matching this row tile
                    pl.BlockSpec((1, tn), lambda c, n: (0, c * inner + n)),
                ],
                out_specs=pl.BlockSpec((8, 128), lambda c, n: (c, 0)),
                scratch_shapes=[pltpu.VMEM((B, tn), jnp.float32)],
            ),
            out_shape=jax.ShapeDtypeStruct((num_cores * 8, 128), jnp.float32),
            compiler_params=pltpu.CompilerParams(
                dimension_semantics=("parallel", "arbitrary"),
                vmem_limit_bytes=vmem_limit,
            ),
            cost_estimate=pl.CostEstimate(
                flops=int(2 * B * Npad * Npad + 3 * B * Npad),
                transcendentals=0,
                bytes_accessed=int(Npad * Npad * p_item + 2 * B * Npad * yp_item
                                   + Npad * 4 + num_cores * 8 * 128 * 4),
            ),
        )

    try:
        # Constant index_map -> a second buffer for the resident y_pred block is
        # pure VMEM waste; request single buffering.
        resident = pl.BlockSpec((B, Npad), lambda c, n: (0, 0),
                                pipeline_mode=pl.Buffered(1))
        out = jax.block_until_ready(
            make_call(resident)(yp_in, P_in, yp_in, invm_in))
    except Exception:
        # Pallas build without BlockSpec.pipeline_mode / Buffered(1) support:
        # fall back to the default double-buffered resident block.
        resident = pl.BlockSpec((B, Npad), lambda c, n: (0, 0))
        out = make_call(resident)(yp_in, P_in, yp_in, invm_in)

    # One scalar per parallel slice lives at out[c*8, 0]; sum them.
    return jnp.sum(out[0::8, 0])


def _reference(y_pred, P, M_raw):
    # Pure-JAX mirror of the PyTorch forward (including M = max(M_raw, 1)).
    B, N = y_pred.shape
    M = jnp.maximum(jnp.asarray(M_raw, jnp.float32), 1.0)
    K = (P.astype(jnp.float32) @ y_pred.T) / M[:, None]
    K = y_pred @ K
    return jnp.sum(jnp.diagonal(K) / N) / B


if __name__ == "__main__":
    key = jax.random.PRNGKey(0)

    # --- Test 1: small shapes, f32 P -> pure f32 path (no casts), tight tol ---
    B, N = 2, 16
    k1, k2, k3 = jax.random.split(key, 3)
    P1 = (jax.random.uniform(k1, (N, N)) > 0.7).astype(jnp.float32)
    M1_raw = jnp.sum(P1, axis=1)                # raw child counts (may contain 0)
    y_pred1 = jax.nn.softmax(jax.random.normal(k2, (B, N)), axis=-1)
    y_true1 = (jax.random.uniform(k3, (B, N)) > 0.5).astype(jnp.float32)

    loss1 = jax.block_until_ready(e_rule_loss(y_pred1, y_true1, P1, M1_raw))
    ref1 = _reference(y_pred1, P1, M1_raw)
    assert jnp.allclose(loss1, ref1, atol=1e-6), (float(loss1), float(ref1))

    # --- Test 2: exercises padding, the 2-slice parallel axis, multi-step
    # accumulation (row_tile=128 -> grid (2, 2)), the M=max(.,1) clamp and bf16
    # P storage (exact 0/1, half HBM traffic; bf16 MXU -> bf16-level tol). ---
    B2, N2 = 4, 300
    k4, k5 = jax.random.split(k3, 2)
    P2 = (jax.random.uniform(k4, (N2, N2)) > 0.7).astype(jnp.float32)
    P2 = P2.at[5].set(0.0)                      # force a zero child-count row
    M2_raw = jnp.sum(P2, axis=1)
    y_pred2 = jax.nn.softmax(jax.random.normal(k5, (B2, N2)), axis=-1)
    y_true2 = jnp.zeros_like(y_pred2)

    loss2 = jax.block_until_ready(
        e_rule_loss(y_pred2, y_true2, P2.astype(jnp.bfloat16), M2_raw,
                    row_tile=128, num_cores=2))
    ref2 = _reference(y_pred2, P2, M2_raw)
    assert jnp.allclose(loss2, ref2, rtol=2e-2, atol=1e-7), (float(loss2), float(ref2))

    # --- Test 3: int8 storage of P (exact 0/1, quarter HBM traffic) with the
    # in-kernel int8->bf16 upcast path; auto num_cores / auto tile. ---
    loss3 = jax.block_until_ready(
        e_rule_loss(y_pred2, y_true2, P2.astype(jnp.int8), M2_raw))
    assert jnp.allclose(loss3, ref2, rtol=2e-2, atol=1e-7), (float(loss3), float(ref2))

    print("KERNEL_OK")
</pallas_src>

<mosaic_0001>
module attributes {stable_mosaic.version = 11 : i64} {
  func.func @e_rule_kernel(%arg0: i32, %arg1: i32, %arg2: memref<2x128xf32, #tpu.memory_space<vmem>>, %arg3: memref<128x128xf32, #tpu.memory_space<vmem>>, %arg4: memref<2x128xf32, #tpu.memory_space<vmem>>, %arg5: memref<1x128xf32, #tpu.memory_space<vmem>>, %arg6: memref<8x128xf32, #tpu.memory_space<vmem>>, %arg7: memref<2x128xf32, #tpu.memory_space<vmem>>) attributes {dimension_semantics = [#tpu.dimension_semantics<parallel>, #tpu.dimension_semantics<arbitrary>], iteration_bounds = array<i64: 1, 1>, scalar_prefetch = 0 : i64, scratch_operands = 1 : i64, tpu.core_type = #tpu.core_type<tc>, window_params = [{pipeline_mode = #tpu.pipeline_mode<synchronous>, transform_indices = @transform_0, window_bounds = array<i64: 2, 128>}, {transform_indices = @transform_1, window_bounds = array<i64: 128, 128>}, {transform_indices = @transform_2, window_bounds = array<i64: 2, 128>}, {transform_indices = @transform_3, window_bounds = array<i64: 1, 128>}, {transform_indices = @transform_4, window_bounds = array<i64: 8, 128>}]} {
    %c0_i32 = arith.constant 0 : i32
    %0 = arith.cmpi eq, %arg1, %c0_i32 : i32
    %1 = arith.extui %0 : i1 to i32
    %c0_i32_0 = arith.constant 0 : i32
    %2 = arith.cmpi ne, %1, %c0_i32_0 : i32
    scf.if %2 {
      %cst_14 = arith.constant 0.000000e+00 : f32
      %17 = vector.broadcast %cst_14 : f32 to vector<2x128xf32>
      %c0_15 = arith.constant 0 : index
      %c0_16 = arith.constant 0 : index
      %18 = vector.load %arg7[%c0_15, %c0_16] : memref<2x128xf32, #tpu.memory_space<vmem>>, vector<2x128xf32>
      tpu.vector_store %arg7[%c0_15, %c0_16], %17 {strides = array<i32>} : memref<2x128xf32, #tpu.memory_space<vmem>>, vector<2x128xf32>,
    } else {
    }
    %c0 = arith.constant 0 : index
    %c0_1 = arith.constant 0 : index
    %3 = vector.load %arg3[%c0, %c0_1] : memref<128x128xf32, #tpu.memory_space<vmem>>, vector<128x128xf32>
    %c0_2 = arith.constant 0 : index
    %c0_3 = arith.constant 0 : index
    %4 = vector.load %arg2[%c0_2, %c0_3] : memref<2x128xf32, #tpu.memory_space<vmem>>, vector<2x128xf32>
    %cst = arith.constant dense<0.000000e+00> : vector<2x128xf32>
    %5 = tpu.matmul %4, %3, %cst {dimension_numbers = #tpu.dot_dimension_numbers<[1], [1], [0], [0], [0, 0, 1, 0], [], []>} : vector<2x128xf32>, vector<128x128xf32>, vector<2x128xf32> -> vector<2x128xf32>
    %c0_4 = arith.constant 0 : index
    %c0_5 = arith.constant 0 : index
    %6 = vector.load %arg7[%c0_4, %c0_5] : memref<2x128xf32, #tpu.memory_space<vmem>>, vector<2x128xf32>
    %c0_6 = arith.constant 0 : index
    %c0_7 = arith.constant 0 : index
    %7 = vector.load %arg4[%c0_6, %c0_7] : memref<2x128xf32, #tpu.memory_space<vmem>>, vector<2x128xf32>
    %c0_8 = arith.constant 0 : index
    %c0_9 = arith.constant 0 : index
    %8 = vector.load %arg5[%c0_8, %c0_9] : memref<1x128xf32, #tpu.memory_space<vmem>>, vector<1x128xf32>
    %9 = vector.broadcast %8 : vector<1x128xf32> to vector<2x128xf32>
    %10 = arith.mulf %7, %9 : vector<2x128xf32>
    %11 = arith.mulf %10, %5 : vector<2x128xf32>
    %12 = arith.addf %6, %11 : vector<2x128xf32>
    %c0_10 = arith.constant 0 : index
    %c0_11 = arith.constant 0 : index
    %13 = vector.load %arg7[%c0_10, %c0_11] : memref<2x128xf32, #tpu.memory_space<vmem>>, vector<2x128xf32>
    tpu.vector_store %arg7[%c0_10, %c0_11], %12 {strides = array<i32>} : memref<2x128xf32, #tpu.memory_space<vmem>>, vector<2x128xf32>,
    %c0_i32_12 = arith.constant 0 : i32
    %14 = arith.cmpi eq, %arg1, %c0_i32_12 : i32
    %15 = arith.extui %14 : i1 to i32
    %c0_i32_13 = arith.constant 0 : i32
    %16 = arith.cmpi ne, %15, %c0_i32_13 : i32
    scf.if %16 {
      %c0_14 = arith.constant 0 : index
      %c0_15 = arith.constant 0 : index
      %17 = vector.load %arg7[%c0_14, %c0_15] : memref<2x128xf32, #tpu.memory_space<vmem>>, vector<2x128xf32>
      %18 = vector.shape_cast %17 : vector<2x128xf32> to vector<1x2x128xf32>
      %cst_16 = arith.constant dense<0.000000e+00> : vector<1xf32>
      %19 = vector.multi_reduction <add>, %18, %cst_16 [1, 2] : vector<1x2x128xf32> to vector<1xf32>
      %20 = vector.shape_cast %19 : vector<1xf32> to vector<1x1x1xf32>
      %21 = vector.extract %20[0, 0, 0] : f32 from vector<1x1x1xf32>
      %cst_17 = arith.constant 3.125000e-02 : f32
      %22 = arith.mulf %21, %cst_17 : f32
      %cst_18 = arith.constant 0.000000e+00 : f32
      %23 = vector.broadcast %cst_18 : f32 to vector<8x128xf32>
      %24 = vector.broadcast %22 : f32 to vector<8x128xf32>
      %25 = arith.addf %23, %24 : vector<8x128xf32>
      %c0_19 = arith.constant 0 : index
      %c0_20 = arith.constant 0 : index
      %26 = vector.load %arg6[%c0_19, %c0_20] : memref<8x128xf32, #tpu.memory_space<vmem>>, vector<8x128xf32>
      tpu.vector_store %arg6[%c0_19, %c0_20], %25 {strides = array<i32>} : memref<8x128xf32, #tpu.memory_space<vmem>>, vector<8x128xf32>,
    } else {
    }
    return
  }
  func.func @transform_0(%arg0: i32, %arg1: i32) -> (i32, i32) {
    %c0_i32 = arith.constant 0 : i32
    %c0_i32_0 = arith.constant 0 : i32
    %c0_i32_1 = arith.constant 0 : i32
    return %c0_i32, %c0_i32_0 : i32, i32
  }
  func.func @transform_1(%arg0: i32, %arg1: i32) -> (i32, i32) {
    %c1_i32 = arith.constant 1 : i32
    %0 = arith.muli %arg0, %c1_i32 : i32
    %1 = arith.addi %0, %arg1 : i32
    %c0_i32 = arith.constant 0 : i32
    %c0_i32_0 = arith.constant 0 : i32
    return %1, %c0_i32 : i32, i32
  }
  func.func @transform_2(%arg0: i32, %arg1: i32) -> (i32, i32) {
    %c1_i32 = arith.constant 1 : i32
    %0 = arith.muli %arg0, %c1_i32 : i32
    %1 = arith.addi %0, %arg1 : i32
    %c0_i32 = arith.constant 0 : i32
    %c0_i32_0 = arith.constant 0 : i32
    return %c0_i32, %1 : i32, i32
  }
  func.func @transform_3(%arg0: i32, %arg1: i32) -> (i32, i32) {
    %c1_i32 = arith.constant 1 : i32
    %0 = arith.muli %arg0, %c1_i32 : i32
    %1 = arith.addi %0, %arg1 : i32
    %c0_i32 = arith.constant 0 : i32
    %c0_i32_0 = arith.constant 0 : i32
    return %c0_i32, %1 : i32, i32
  }
  func.func @transform_4(%arg0: i32, %arg1: i32) -> (i32, i32) {
    %c0_i32 = arith.constant 0 : i32
    %c0_i32_0 = arith.constant 0 : i32
    return %arg0, %c0_i32 : i32, i32
  }
}

module attributes {stable_mosaic.version = 11 : i64} {
  func.func @e_rule_kernel(%arg0: i32, %arg1: i32, %arg2: memref<2x128xf32, #tpu.memory_space<vmem>>, %arg3: memref<128x128xf32, #tpu.memory_space<vmem>>, %arg4: memref<2x128xf32, #tpu.memory_space<vmem>>, %arg5: memref<1x128xf32, #tpu.memory_space<vmem>>, %arg6: memref<8x128xf32, #tpu.memory_space<vmem>>, %arg7: memref<2x128xf32, #tpu.memory_space<vmem>>) attributes {dimension_semantics = [#tpu.dimension_semantics<parallel>, #tpu.dimension_semantics<arbitrary>], iteration_bounds = array<i64: 1, 1>, scalar_prefetch = 0 : i64, scratch_operands = 1 : i64, tpu.core_type = #tpu.core_type<tc>, window_params = [{pipeline_mode = #tpu.pipeline_mode<synchronous>, transform_indices = @transform_0, window_bounds = array<i64: 2, 128>}, {transform_indices = @transform_1, window_bounds = array<i64: 128, 128>}, {transform_indices = @transform_2, window_bounds = array<i64: 2, 128>}, {transform_indices = @transform_3, window_bounds = array<i64: 1, 128>}, {transform_indices = @transform_4, window_bounds = array<i64: 8, 128>}]} {
    %c0_i32 = arith.constant 0 : i32
    %0 = arith.cmpi eq, %arg1, %c0_i32 : i32
    %1 = arith.extui %0 : i1 to i32
    %c0_i32_0 = arith.constant 0 : i32
    %2 = arith.cmpi ne, %1, %c0_i32_0 : i32
    scf.if %2 {
      %cst_14 = arith.constant 0.000000e+00 : f32
      %17 = vector.broadcast %cst_14 : f32 to vector<2x128xf32>
      %c0_15 = arith.constant 0 : index
      %c0_16 = arith.constant 0 : index
      %18 = vector.load %arg7[%c0_15, %c0_16] : memref<2x128xf32, #tpu.memory_space<vmem>>, vector<2x128xf32>
      tpu.vector_store %arg7[%c0_15, %c0_16], %17 {strides = array<i32>} : memref<2x128xf32, #tpu.memory_space<vmem>>, vector<2x128xf32>,
    } else {
    }
    %c0 = arith.constant 0 : index
    %c0_1 = arith.constant 0 : index
    %3 = vector.load %arg3[%c0, %c0_1] : memref<128x128xf32, #tpu.memory_space<vmem>>, vector<128x128xf32>
    %c0_2 = arith.constant 0 : index
    %c0_3 = arith.constant 0 : index
    %4 = vector.load %arg2[%c0_2, %c0_3] : memref<2x128xf32, #tpu.memory_space<vmem>>, vector<2x128xf32>
    %cst = arith.constant dense<0.000000e+00> : vector<2x128xf32>
    %5 = tpu.matmul %4, %3, %cst {dimension_numbers = #tpu.dot_dimension_numbers<[1], [1], [0], [0], [0, 0, 1, 0], [], []>} : vector<2x128xf32>, vector<128x128xf32>, vector<2x128xf32> -> vector<2x128xf32>
    %c0_4 = arith.constant 0 : index
    %c0_5 = arith.constant 0 : index
    %6 = vector.load %arg7[%c0_4, %c0_5] : memref<2x128xf32, #tpu.memory_space<vmem>>, vector<2x128xf32>
    %c0_6 = arith.constant 0 : index
    %c0_7 = arith.constant 0 : index
    %7 = vector.load %arg4[%c0_6, %c0_7] : memref<2x128xf32, #tpu.memory_space<vmem>>, vector<2x128xf32>
    %c0_8 = arith.constant 0 : index
    %c0_9 = arith.constant 0 : index
    %8 = vector.load %arg5[%c0_8, %c0_9] : memref<1x128xf32, #tpu.memory_space<vmem>>, vector<1x128xf32>
    %9 = vector.broadcast %8 : vector<1x128xf32> to vector<2x128xf32>
    %10 = arith.mulf %7, %9 : vector<2x128xf32>
    %11 = arith.mulf %10, %5 : vector<2x128xf32>
    %12 = arith.addf %6, %11 : vector<2x128xf32>
    %c0_10 = arith.constant 0 : index
    %c0_11 = arith.constant 0 : index
    %13 = vector.load %arg7[%c0_10, %c0_11] : memref<2x128xf32, #tpu.memory_space<vmem>>, vector<2x128xf32>
    tpu.vector_store %arg7[%c0_10, %c0_11], %12 {strides = array<i32>} : memref<2x128xf32, #tpu.memory_space<vmem>>, vector<2x128xf32>,
    %c0_i32_12 = arith.constant 0 : i32
    %14 = arith.cmpi eq, %arg1, %c0_i32_12 : i32
    %15 = arith.extui %14 : i1 to i32
    %c0_i32_13 = arith.constant 0 : i32
    %16 = arith.cmpi ne, %15, %c0_i32_13 : i32
    scf.if %16 {
      %c0_14 = arith.constant 0 : index
      %c0_15 = arith.constant 0 : index
      %17 = vector.load %arg7[%c0_14, %c0_15] : memref<2x128xf32, #tpu.memory_space<vmem>>, vector<2x128xf32>
      %18 = vector.shape_cast %17 : vector<2x128xf32> to vector<1x2x128xf32>
      %cst_16 = arith.constant dense<0.000000e+00> : vector<1xf32>
      %19 = vector.multi_reduction <add>, %18, %cst_16 [1, 2] : vector<1x2x128xf32> to vector<1xf32>
      %20 = vector.shape_cast %19 : vector<1xf32> to vector<1x1x1xf32>
      %21 = vector.extract %20[0, 0, 0] : f32 from vector<1x1x1xf32>
      %cst_17 = arith.constant 3.125000e-02 : f32
      %22 = arith.mulf %21, %cst_17 : f32
      %cst_18 = arith.constant 0.000000e+00 : f32
      %23 = vector.broadcast %cst_18 : f32 to vector<8x128xf32>
      %24 = vector.broadcast %22 : f32 to vector<8x128xf32>
      %25 = arith.addf %23, %24 : vector<8x128xf32>
      %c0_19 = arith.constant 0 : index
      %c0_20 = arith.constant 0 : index
      %26 = vector.load %arg6[%c0_19, %c0_20] : memref<8x128xf32, #tpu.memory_space<vmem>>, vector<8x128xf32>
      tpu.vector_store %arg6[%c0_19, %c0_20], %25 {strides = array<i32>} : memref<8x128xf32, #tpu.memory_space<vmem>>, vector<8x128xf32>,
    } else {
    }
    return
  }
  func.func @transform_0(%arg0: i32, %arg1: i32) -> (i32, i32) {
    %c0_i32 = arith.constant 0 : i32
    %c0_i32_0 = arith.constant 0 : i32
    %c0_i32_1 = arith.constant 0 : i32
    return %c0_i32, %c0_i32_0 : i32, i32
  }
  func.func @transform_1(%arg0: i32, %arg1: i32) -> (i32, i32) {
    %c1_i32 = arith.constant 1 : i32
    %0 = arith.muli %arg0, %c1_i32 : i32
    %1 = arith.addi %0, %arg1 : i32
    %c0_i32 = arith.constant 0 : i32
    %c0_i32_0 = arith.constant 0 : i32
    return %1, %c0_i32 : i32, i32
  }
  func.func @transform_2(%arg0: i32, %arg1: i32) -> (i32, i32) {
    %c1_i32 = arith.constant 1 : i32
    %0 = arith.muli %arg0, %c1_i32 : i32
    %1 = arith.addi %0, %arg1 : i32
    %c0_i32 = arith.constant 0 : i32
    %c0_i32_0 = arith.constant 0 : i32
    return %c0_i32, %1 : i32, i32
  }
  func.func @transform_3(%arg0: i32, %arg1: i32) -> (i32, i32) {
    %c1_i32 = arith.constant 1 : i32
    %0 = arith.muli %arg0, %c1_i32 : i32
    %1 = arith.addi %0, %arg1 : i32
    %c0_i32 = arith.constant 0 : i32
    %c0_i32_0 = arith.constant 0 : i32
    return %c0_i32, %1 : i32, i32
  }
  func.func @transform_4(%arg0: i32, %arg1: i32) -> (i32, i32) {
    %c0_i32 = arith.constant 0 : i32
    %c0_i32_0 = arith.constant 0 : i32
    return %arg0, %c0_i32 : i32, i32
  }
}

</mosaic_0001>

<llo_original>
// kernel: tpu_custom_call.1
$region0: #{tpu_custom_call.1}
  #allocation0 [shape = 'u32[]', space=smem, size = 0x4, offset = 0x4, fixed_abs, tag = 'smem constant byte address 0x4 - core index']
  #allocation1 [shape = 'u32[144,128]{1,0:T(1,128)}', space=vmem, size = 0x12000, scoped, tag = 'internal scratch']
  #allocation2 [shape = 'f32[2,128]{1,0:T(2,128)}', space=vmem, size = 0x400, scoped, tag = 'scratch operand']
  %s0 = inlined_call_operand.hbm [shape: f32[2,128], index: 0, kind: input, shape index: {}]
  %s1 = inlined_call_operand.hbm [shape: f32[128,128], index: 1, kind: input, shape index: {}]
  %s2 = inlined_call_operand.vmem [shape: f32[2,128], index: 2, kind: input, shape index: {}]
  %s3 = inlined_call_operand.vmem [shape: f32[1,128], index: 3, kind: input, shape index: {}]
  %s4 = inlined_call_operand.hbm [shape: f32[8,128], index: 4, kind: output, shape index: {}]
  %s5 = sld [smem:[#allocation0]]
  $region42: #{tpu_custom_call.1} parent=0
    _
  %s7 = ssub.s32 1, %s5
  %s8 = scalar_select 0, %s7, %s5
  $region1: #{tpu_custom_call.1} parent=0
    #allocation3 [shape = 'u8[1024]{0}', space=vmem, size = 0x400, scoped, tag = 'input window, operand 0, single buffered']
    #allocation4 [shape = 's32[1]{0}', space=sflag, size = 0x4, scoped, tag = 'scoped memory for tpu_custom_call.1']
    #allocation5 [shape = 's32[1]{0}', space=sflag, size = 0x4, scoped, tag = 'scoped memory for tpu_custom_call.1']
    #allocation6 [shape = 'u8[65536]{0}', space=vmem, size = 0x10000, scoped, tag = 'input window, operand 1, single buffered']
    #allocation7 [shape = 's32[1]{0}', space=sflag, size = 0x4, scoped, tag = 'scoped memory for tpu_custom_call.1']
    #allocation8 [shape = 'u8[4096]{0}', space=vmem, size = 0x1000, scoped, tag = 'output window, operand 0, single buffered']
    %9 = vsyncpa [#allocation4], 0
    %10 = vsyncpa [#allocation7], 0
    %11 = vsyncpa [#allocation5], 0
    // Predicated region
    $region2: #{tpu_custom_call.1} parent=1 // pred_check
      _
    $region3: #{tpu_custom_call.1} parent=1 // pred_check_branch
      %13 = sbr.rel (0) target = $region5
    $region4: #{tpu_custom_call.1} parent=1 // pred_region
      %s15 = ssub.s32 32, 32
      %16 = vsyncadd [#allocation4], %s15
      %s18 = sshll.u32 [#allocation3], 4
      %s19 = int_to_ptr.vmem [resolvable:$true] %s18
      %21 = dma.hbm_to_vmem [thread:$0]  %s0, 32, %s19, [#allocation4]
    $region5: #{tpu_custom_call.1} parent=1 // pred_fallthru
      _
    // Predicated region
    $region6: #{tpu_custom_call.1} parent=1 // pred_check
      _
    $region7: #{tpu_custom_call.1} parent=1 // pred_check_branch
      %23 = sbr.rel (0) target = $region9
    $region8: #{tpu_custom_call.1} parent=1 // pred_region
      %s24 = sadd.s32 0, 0
      %s25 = smul.u32 16, %s24
      %s27 = ssub.s32 2048, 2048
      %28 = vsyncadd [#allocation7], %s27
      %s29 = smul.addr %s25, 128
      %s30 = scalar_lea.hbm %s1, %s29
      %s31 = sshll.u32 [#allocation6], 4
      %s32 = int_to_ptr.vmem [resolvable:$true] %s31
      %37 = dma.hbm_to_vmem [thread:$0]  %s30, 2048, %s32, [#allocation7], 128, 128, 8
    $region9: #{tpu_custom_call.1} parent=1 // pred_fallthru
      _
    // Predicated region
    $region10: #{tpu_custom_call.1} parent=1 // pred_check
      _
    $region11: #{tpu_custom_call.1} parent=1 // pred_check_branch
      %39 = sbr.rel (0) target = $region13
    $region12: #{tpu_custom_call.1} parent=1 // pred_region
      %s40 = sadd.s32 0, 0
      %p41 = scmp.lt.s32.totalorder %s40, 0
      %s42 = scalar_select %p41, %s40, 0
      %s43 = smul.addr %s42, 2
      %s44 = scalar_lea.vmem %s2, %s43
      %s45 = sadd.s32 0, 0
    $region13: #{tpu_custom_call.1} parent=1 // pred_fallthru
      _
    // Predicated region
    $region14: #{tpu_custom_call.1} parent=1 // pred_check
      _
    $region15: #{tpu_custom_call.1} parent=1 // pred_check_branch
      %47 = sbr.rel (0) target = $region17
    $region16: #{tpu_custom_call.1} parent=1 // pred_region
      %s48 = sadd.s32 0, 0
      %p49 = scmp.lt.s32.totalorder %s48, 0
      %s50 = scalar_select %p49, %s48, 0
      %s51 = scalar_lea.vmem %s3, %s50
      %s52 = sadd.s32 0, 0
    $region17: #{tpu_custom_call.1} parent=1 // pred_fallthru
      _
    // Predicated region
    $region18: #{tpu_custom_call.1} parent=1 // pred_check
      _
    $region19: #{tpu_custom_call.1} parent=1 // pred_check_branch
      %54 = sbr.rel (0) target = $region21
    $region20: #{tpu_custom_call.1} parent=1 // pred_region
      %55 = dma.done [#allocation4], 32
    $region21: #{tpu_custom_call.1} parent=1 // pred_fallthru
      _
    // Predicated region
    $region22: #{tpu_custom_call.1} parent=1 // pred_check
      _
    $region23: #{tpu_custom_call.1} parent=1 // pred_check_branch
      %57 = sbr.rel (0) target = $region25
    $region24: #{tpu_custom_call.1} parent=1 // pred_region
      %58 = dma.done [#allocation7], 2048
    $region25: #{tpu_custom_call.1} parent=1 // pred_fallthru
      _
    %s59 = sadd.s32 0, 0
    %p60 = scmp.lt.s32.totalorder %s59, 0
    %s61 = scalar_select %p60, %s59, 0
    %s62 = smul.addr %s61, 2
    %s63 = scalar_lea.vmem %s2, %s62
    %s64 = sadd.s32 0, 0
    %p65 = scmp.lt.s32.totalorder %s64, 0
    %s66 = scalar_select %p65, %s64, 0
    %s67 = scalar_lea.vmem %s3, %s66
    %s68 = sadd.s32 0, 0
    %s69 = smul.u32 16, %s68
    %s70 = sadd.s32 0, 0
    %p71 = scmp.lt.s32.totalorder %s70, 0
    %s72 = scalar_select %p71, %s70, 0
    %s73 = smul.addr %s72, 2
    %s74 = scalar_lea.vmem %s2, %s73
    %s75 = sadd.s32 0, 0
    %s76 = sadd.s32 0, 0
    %p77 = scmp.lt.s32.totalorder %s76, 0
    %s78 = scalar_select %p77, %s76, 0
    %s79 = scalar_lea.vmem %s3, %s78
    %s80 = sadd.s32 0, 0
    %p81 = scmp.eq.s32.totalorder 0, 0
    // Predicated region
    $region26: #{tpu_custom_call.1} parent=1 // pred_check
      %p82 = pneg %p81
    $region27: #{tpu_custom_call.1} parent=1 // pred_check_branch
      %84 = sbr.rel (%p82) target = $region29
    $region28: #{tpu_custom_call.1} parent=1 // pred_region
      %85 = vst [vmem:[#allocation2] sm:$0x3] 0.0
    $region29: #{tpu_custom_call.1} parent=1 // pred_fallthru
      _
    %v86 = vld [vmem:[#allocation6] sm:$0xff]
    %v87 = vld [vmem:[#allocation6 + $0x8] sm:$0xff]
    %v88 = vld [vmem:[#allocation6 + $0x10] sm:$0xff]
    %v89 = vld [vmem:[#allocation6 + $0x18] sm:$0xff]
    %v90 = vld [vmem:[#allocation6 + $0x20] sm:$0xff]
    %v91 = vld [vmem:[#allocation6 + $0x28] sm:$0xff]
    %v92 = vld [vmem:[#allocation6 + $0x30] sm:$0xff]
    %v93 = vld [vmem:[#allocation6 + $0x38] sm:$0xff]
    %v94 = vld [vmem:[#allocation6 + $0x40] sm:$0xff]
    %v95 = vld [vmem:[#allocation6 + $0x48] sm:$0xff]
    %v96 = vld [vmem:[#allocation6 + $0x50] sm:$0xff]
    %v97 = vld [vmem:[#allocation6 + $0x58] sm:$0xff]
    %v98 = vld [vmem:[#allocation6 + $0x60] sm:$0xff]
    %v99 = vld [vmem:[#allocation6 + $0x68] sm:$0xff]
    %v100 = vld [vmem:[#allocation6 + $0x70] sm:$0xff]
    %v101 = vld [vmem:[#allocation6 + $0x78] sm:$0xff]
    %v102 = vld [vmem:[#allocation3] sm:$0x3]
    %103 = vmatprep.subr.mxu0 0.0
    %104 = vmatpush1.xpose.msra.mxu0 %v101
    %105 = vmatprep.subr.mxu0 0.0
    %106 = vmatpush1.xpose.msra.mxu0 %v100
    %107 = vmatprep.subr.mxu0 0.0
    %108 = vmatpush1.xpose.msra.mxu0 %v99
    %109 = vmatprep.subr.mxu0 0.0
    %110 = vmatpush1.xpose.msra.mxu0 %v98
    %111 = vmatprep.subr.mxu0 0.0
    %112 = vmatpush1.xpose.msra.mxu0 %v97
    %113 = vmatprep.subr.mxu0 0.0
    %114 = vmatpush1.xpose.msra.mxu0 %v96
    %115 = vmatprep.subr.mxu0 0.0
    %116 = vmatpush1.xpose.msra.mxu0 %v95
    %117 = vmatprep.subr.mxu0 0.0
    %118 = vmatpush1.xpose.msra.mxu0 %v94
    %119 = vmatprep.subr.mxu0 0.0
    %120 = vmatpush1.xpose.msra.mxu0 %v93
    %121 = vmatprep.subr.mxu0 0.0
    %122 = vmatpush1.xpose.msra.mxu0 %v92
    %123 = vmatprep.subr.mxu0 0.0
    %124 = vmatpush1.xpose.msra.mxu0 %v91
    %125 = vmatprep.subr.mxu0 0.0
    %126 = vmatpush1.xpose.msra.mxu0 %v90
    %127 = vmatprep.subr.mxu0 0.0
    %128 = vmatpush1.xpose.msra.mxu0 %v89
    %129 = vmatprep.subr.mxu0 0.0
    %130 = vmatpush1.xpose.msra.mxu0 %v88
    %131 = vmatprep.subr.mxu0 0.0
    %132 = vmatpush1.xpose.msra.mxu0 %v87
    %133 = vmatprep.subr.mxu0 0.0
    %134 = vmatpush1.xpose.msra.mxu0 %v86
    %135 = vmatprep.subr.mxu0 0.0
    %136 = vmatpush2.xpose.msra.mxu0 0.0
    %137 = vmatprep.subr.mxu0 0.0
    %138 = vmatpush2.xpose.msra.mxu0 0.0
    %139 = vmatprep.subr.mxu0 0.0
    %140 = vmatpush2.xpose.msra.mxu0 0.0
    %141 = vmatprep.subr.mxu0 0.0
    %142 = vmatpush2.xpose.msra.mxu0 0.0
    %143 = vmatprep.subr.mxu0 0.0
    %144 = vmatpush2.xpose.msra.mxu0 0.0
    %145 = vmatprep.subr.mxu0 0.0
    %146 = vmatpush2.xpose.msra.mxu0 0.0
    %147 = vmatprep.subr.mxu0 0.0
    %148 = vmatpush2.xpose.msra.mxu0 0.0
    %149 = vmatprep.subr.mxu0 0.0
    %150 = vmatpush2.xpose.msra.mxu0 0.0
    %151 = vmatprep.subr.mxu0 0.0
    %152 = vmatpush2.xpose.msra.mxu0 0.0
    %153 = vmatprep.subr.mxu0 0.0
    %154 = vmatpush2.xpose.msra.mxu0 0.0
    %155 = vmatprep.subr.mxu0 0.0
    %156 = vmatpush2.xpose.msra.mxu0 0.0
    %157 = vmatprep.subr.mxu0 0.0
    %158 = vmatpush2.xpose.msra.mxu0 0.0
    %159 = vmatprep.subr.mxu0 0.0
    %160 = vmatpush2.xpose.msra.mxu0 0.0
    %161 = vmatprep.subr.mxu0 0.0
    %162 = vmatpush2.xpose.msra.mxu0 0.0
    %163 = vmatprep.subr.mxu0 0.0
    %164 = vmatpush2.xpose.msra.mxu0 0.0
    %165 = vmatprep.subr.mxu0 0.0
    %166 = vmatpush2.xpose.msra.mxu0 0.0
    %167 = vmatprep.mubr.f32.mxu0 0.0
    %168 = vmatmul.mubr.f32.gmra.mxu0 %v102
    %v169 = vpop.f32.mrf.mxu0
    %v170 = vadd.f32 0.0, %v169
    %v171 = vpop.f32.mrf.mxu0
    %172 = vdwg.mxu0
    %v173 = vld [vmem:[#allocation2] sm:$0x3]
    %v174 = vld [vmem:[%s74] sm:$0x3]
    %v175 = vld [vmem:[%s79] sm:$0x1]
    %v177 = vlaneseq
    %v178 = vshrl.u32 %v177, 7
    %v179 = vsub.s32 0, %v178
    %v180 = vrot.slane %v175, %v179
    %v182 = vmul.f32 %v174, %v180
    %v183 = vmul.f32 %v182, %v170
    %v184 = vadd.f32 %v173, %v183
    %185 = vst [vmem:[#allocation2] sm:$0x3] %v184
    // Predicated region
    $region30: #{tpu_custom_call.1} parent=1 // pred_check
      %p186 = pneg %p81
    $region31: #{tpu_custom_call.1} parent=1 // pred_check_branch
      %188 = sbr.rel (%p186) target = $region33
    $region32: #{tpu_custom_call.1} parent=1 // pred_region
      %v189 = vld [vmem:[#allocation2] sm:$0x3]
      %vm190 = vcmask 1041408
      %v191 = vsel %vm190, %v189, 0.0
      %192 = vadd.xlane.f32.xlu0 %v191
      %v193 = vpop.xlane.xlu0 %192
      %v194 = vrot.slane %v193, 4
      %v195 = vadd.f32 %v193, %v194
      %v196 = vrot.slane %v195, 2
      %v197 = vadd.f32 %v195, %v196
      %v198 = vrot.slane %v197, 1
      %v199 = vadd.f32 %v197, %v198
      %s200 = vtos %v199
      %s201 = smul.f32 %s200, 0.03125
      %v202 = vstv %s201
      %v203 = vadd.f32 %v202, 0.0
      %204 = vst [vmem:[#allocation8] sm:$0xff] %v203
    $region33: #{tpu_custom_call.1} parent=1 // pred_fallthru
      _
    // Predicated region
    $region34: #{tpu_custom_call.1} parent=1 // pred_check
      _
    $region35: #{tpu_custom_call.1} parent=1 // pred_check_branch
      %206 = sbr.rel (0) target = $region37
    $region36: #{tpu_custom_call.1} parent=1 // pred_region
      %s208 = ssub.s32 128, 128
      %209 = vsyncadd [#allocation5], %s208
      %s211 = sshll.u32 [#allocation8], 4
      %s212 = int_to_ptr.vmem [resolvable:$true] %s211
      %214 = dma.vmem_to_hbm [thread:$0]  %s212, 128, %s4, [#allocation5]
    $region37: #{tpu_custom_call.1} parent=1 // pred_fallthru
      _
    // Predicated region
    $region38: #{tpu_custom_call.1} parent=1 // pred_check
      _
    $region39: #{tpu_custom_call.1} parent=1 // pred_check_branch
      %216 = sbr.rel (0) target = $region41
    $region40: #{tpu_custom_call.1} parent=1 // pred_region
      %217 = dma.done [#allocation5], 128
    $region41: #{tpu_custom_call.1} parent=1 // pred_fallthru
      _
    %218 = vsyncpa [#allocation4], 1
    %219 = vsyncpa [#allocation7], 1
    %220 = vsyncpa [#allocation5], 1

// kernel: tpu_custom_call.1
$region0: #{tpu_custom_call.1}
  #allocation0 [shape = 'u32[]', space=smem, size = 0x4, offset = 0x4, fixed_abs, tag = 'smem constant byte address 0x4 - core index']
  #allocation1 [shape = 'u32[144,128]{1,0:T(1,128)}', space=vmem, size = 0x12000, scoped, tag = 'internal scratch']
  #allocation2 [shape = 'f32[2,128]{1,0:T(2,128)}', space=vmem, size = 0x400, scoped, tag = 'scratch operand']
  %s0 = inlined_call_operand.hbm [shape: f32[2,128], index: 0, kind: input, shape index: {}]
  %s1 = inlined_call_operand.hbm [shape: f32[128,128], index: 1, kind: input, shape index: {}]
  %s2 = inlined_call_operand.vmem [shape: f32[2,128], index: 2, kind: input, shape index: {}]
  %s3 = inlined_call_operand.vmem [shape: f32[1,128], index: 3, kind: input, shape index: {}]
  %s4 = inlined_call_operand.hbm [shape: f32[8,128], index: 4, kind: output, shape index: {}]
  %s5 = sld [smem:[#allocation0]]
  $region42: #{tpu_custom_call.1} parent=0
    _
  %s7 = ssub.s32 1, %s5
  %s8 = scalar_select 0, %s7, %s5
  $region1: #{tpu_custom_call.1} parent=0
    #allocation3 [shape = 'u8[1024]{0}', space=vmem, size = 0x400, scoped, tag = 'input window, operand 0, single buffered']
    #allocation4 [shape = 's32[1]{0}', space=sflag, size = 0x4, scoped, tag = 'scoped memory for tpu_custom_call.1']
    #allocation5 [shape = 's32[1]{0}', space=sflag, size = 0x4, scoped, tag = 'scoped memory for tpu_custom_call.1']
    #allocation6 [shape = 'u8[65536]{0}', space=vmem, size = 0x10000, scoped, tag = 'input window, operand 1, single buffered']
    #allocation7 [shape = 's32[1]{0}', space=sflag, size = 0x4, scoped, tag = 'scoped memory for tpu_custom_call.1']
    #allocation8 [shape = 'u8[4096]{0}', space=vmem, size = 0x1000, scoped, tag = 'output window, operand 0, single buffered']
    %9 = vsyncpa [#allocation4], 0
    %10 = vsyncpa [#allocation7], 0
    %11 = vsyncpa [#allocation5], 0
    // Predicated region
    $region2: #{tpu_custom_call.1} parent=1 // pred_check
      _
    $region3: #{tpu_custom_call.1} parent=1 // pred_check_branch
      %13 = sbr.rel (0) target = $region5
    $region4: #{tpu_custom_call.1} parent=1 // pred_region
      %s15 = ssub.s32 32, 32
      %16 = vsyncadd [#allocation4], %s15
      %s18 = sshll.u32 [#allocation3], 4
      %s19 = int_to_ptr.vmem [resolvable:$true] %s18
      %21 = dma.hbm_to_vmem [thread:$0]  %s0, 32, %s19, [#allocation4]
    $region5: #{tpu_custom_call.1} parent=1 // pred_fallthru
      _
    // Predicated region
    $region6: #{tpu_custom_call.1} parent=1 // pred_check
      _
    $region7: #{tpu_custom_call.1} parent=1 // pred_check_branch
      %23 = sbr.rel (0) target = $region9
    $region8: #{tpu_custom_call.1} parent=1 // pred_region
      %s24 = sadd.s32 0, 0
      %s25 = smul.u32 16, %s24
      %s27 = ssub.s32 2048, 2048
      %28 = vsyncadd [#allocation7], %s27
      %s29 = smul.addr %s25, 128
      %s30 = scalar_lea.hbm %s1, %s29
      %s31 = sshll.u32 [#allocation6], 4
      %s32 = int_to_ptr.vmem [resolvable:$true] %s31
      %37 = dma.hbm_to_vmem [thread:$0]  %s30, 2048, %s32, [#allocation7], 128, 128, 8
    $region9: #{tpu_custom_call.1} parent=1 // pred_fallthru
      _
    // Predicated region
    $region10: #{tpu_custom_call.1} parent=1 // pred_check
      _
    $region11: #{tpu_custom_call.1} parent=1 // pred_check_branch
      %39 = sbr.rel (0) target = $region13
    $region12: #{tpu_custom_call.1} parent=1 // pred_region
      %s40 = sadd.s32 0, 0
      %p41 = scmp.lt.s32.totalorder %s40, 0
      %s42 = scalar_select %p41, %s40, 0
      %s43 = smul.addr %s42, 2
      %s44 = scalar_lea.vmem %s2, %s43
      %s45 = sadd.s32 0, 0
    $region13: #{tpu_custom_call.1} parent=1 // pred_fallthru
      _
    // Predicated region
    $region14: #{tpu_custom_call.1} parent=1 // pred_check
      _
    $region15: #{tpu_custom_call.1} parent=1 // pred_check_branch
      %47 = sbr.rel (0) target = $region17
    $region16: #{tpu_custom_call.1} parent=1 // pred_region
      %s48 = sadd.s32 0, 0
      %p49 = scmp.lt.s32.totalorder %s48, 0
      %s50 = scalar_select %p49, %s48, 0
      %s51 = scalar_lea.vmem %s3, %s50
      %s52 = sadd.s32 0, 0
    $region17: #{tpu_custom_call.1} parent=1 // pred_fallthru
      _
    // Predicated region
    $region18: #{tpu_custom_call.1} parent=1 // pred_check
      _
    $region19: #{tpu_custom_call.1} parent=1 // pred_check_branch
      %54 = sbr.rel (0) target = $region21
    $region20: #{tpu_custom_call.1} parent=1 // pred_region
      %55 = dma.done [#allocation4], 32
    $region21: #{tpu_custom_call.1} parent=1 // pred_fallthru
      _
    // Predicated region
    $region22: #{tpu_custom_call.1} parent=1 // pred_check
      _
    $region23: #{tpu_custom_call.1} parent=1 // pred_check_branch
      %57 = sbr.rel (0) target = $region25
    $region24: #{tpu_custom_call.1} parent=1 // pred_region
      %58 = dma.done [#allocation7], 2048
    $region25: #{tpu_custom_call.1} parent=1 // pred_fallthru
      _
    %s59 = sadd.s32 0, 0
    %p60 = scmp.lt.s32.totalorder %s59, 0
    %s61 = scalar_select %p60, %s59, 0
    %s62 = smul.addr %s61, 2
    %s63 = scalar_lea.vmem %s2, %s62
    %s64 = sadd.s32 0, 0
    %p65 = scmp.lt.s32.totalorder %s64, 0
    %s66 = scalar_select %p65, %s64, 0
    %s67 = scalar_lea.vmem %s3, %s66
    %s68 = sadd.s32 0, 0
    %s69 = smul.u32 16, %s68
    %s70 = sadd.s32 0, 0
    %p71 = scmp.lt.s32.totalorder %s70, 0
    %s72 = scalar_select %p71, %s70, 0
    %s73 = smul.addr %s72, 2
    %s74 = scalar_lea.vmem %s2, %s73
    %s75 = sadd.s32 0, 0
    %s76 = sadd.s32 0, 0
    %p77 = scmp.lt.s32.totalorder %s76, 0
    %s78 = scalar_select %p77, %s76, 0
    %s79 = scalar_lea.vmem %s3, %s78
    %s80 = sadd.s32 0, 0
    %p81 = scmp.eq.s32.totalorder 0, 0
    // Predicated region
    $region26: #{tpu_custom_call.1} parent=1 // pred_check
      %p82 = pneg %p81
    $region27: #{tpu_custom_call.1} parent=1 // pred_check_branch
      %84 = sbr.rel (%p82) target = $region29
    $region28: #{tpu_custom_call.1} parent=1 // pred_region
      %85 = vst [vmem:[#allocation2] sm:$0x3] 0.0
    $region29: #{tpu_custom_call.1} parent=1 // pred_fallthru
      _
    %v86 = vld [vmem:[#allocation6] sm:$0xff]
    %v87 = vld [vmem:[#allocation6 + $0x8] sm:$0xff]
    %v88 = vld [vmem:[#allocation6 + $0x10] sm:$0xff]
    %v89 = vld [vmem:[#allocation6 + $0x18] sm:$0xff]
    %v90 = vld [vmem:[#allocation6 + $0x20] sm:$0xff]
    %v91 = vld [vmem:[#allocation6 + $0x28] sm:$0xff]
    %v92 = vld [vmem:[#allocation6 + $0x30] sm:$0xff]
    %v93 = vld [vmem:[#allocation6 + $0x38] sm:$0xff]
    %v94 = vld [vmem:[#allocation6 + $0x40] sm:$0xff]
    %v95 = vld [vmem:[#allocation6 + $0x48] sm:$0xff]
    %v96 = vld [vmem:[#allocation6 + $0x50] sm:$0xff]
    %v97 = vld [vmem:[#allocation6 + $0x58] sm:$0xff]
    %v98 = vld [vmem:[#allocation6 + $0x60] sm:$0xff]
    %v99 = vld [vmem:[#allocation6 + $0x68] sm:$0xff]
    %v100 = vld [vmem:[#allocation6 + $0x70] sm:$0xff]
    %v101 = vld [vmem:[#allocation6 + $0x78] sm:$0xff]
    %v102 = vld [vmem:[#allocation3] sm:$0x3]
    %103 = vmatprep.subr.mxu0 0.0
    %104 = vmatpush1.xpose.msra.mxu0 %v101
    %105 = vmatprep.subr.mxu0 0.0
    %106 = vmatpush1.xpose.msra.mxu0 %v100
    %107 = vmatprep.subr.mxu0 0.0
    %108 = vmatpush1.xpose.msra.mxu0 %v99
    %109 = vmatprep.subr.mxu0 0.0
    %110 = vmatpush1.xpose.msra.mxu0 %v98
    %111 = vmatprep.subr.mxu0 0.0
    %112 = vmatpush1.xpose.msra.mxu0 %v97
    %113 = vmatprep.subr.mxu0 0.0
    %114 = vmatpush1.xpose.msra.mxu0 %v96
    %115 = vmatprep.subr.mxu0 0.0
    %116 = vmatpush1.xpose.msra.mxu0 %v95
    %117 = vmatprep.subr.mxu0 0.0
    %118 = vmatpush1.xpose.msra.mxu0 %v94
    %119 = vmatprep.subr.mxu0 0.0
    %120 = vmatpush1.xpose.msra.mxu0 %v93
    %121 = vmatprep.subr.mxu0 0.0
    %122 = vmatpush1.xpose.msra.mxu0 %v92
    %123 = vmatprep.subr.mxu0 0.0
    %124 = vmatpush1.xpose.msra.mxu0 %v91
    %125 = vmatprep.subr.mxu0 0.0
    %126 = vmatpush1.xpose.msra.mxu0 %v90
    %127 = vmatprep.subr.mxu0 0.0
    %128 = vmatpush1.xpose.msra.mxu0 %v89
    %129 = vmatprep.subr.mxu0 0.0
    %130 = vmatpush1.xpose.msra.mxu0 %v88
    %131 = vmatprep.subr.mxu0 0.0
    %132 = vmatpush1.xpose.msra.mxu0 %v87
    %133 = vmatprep.subr.mxu0 0.0
    %134 = vmatpush1.xpose.msra.mxu0 %v86
    %135 = vmatprep.subr.mxu0 0.0
    %136 = vmatpush2.xpose.msra.mxu0 0.0
    %137 = vmatprep.subr.mxu0 0.0
    %138 = vmatpush2.xpose.msra.mxu0 0.0
    %139 = vmatprep.subr.mxu0 0.0
    %140 = vmatpush2.xpose.msra.mxu0 0.0
    %141 = vmatprep.subr.mxu0 0.0
    %142 = vmatpush2.xpose.msra.mxu0 0.0
    %143 = vmatprep.subr.mxu0 0.0
    %144 = vmatpush2.xpose.msra.mxu0 0.0
    %145 = vmatprep.subr.mxu0 0.0
    %146 = vmatpush2.xpose.msra.mxu0 0.0
    %147 = vmatprep.subr.mxu0 0.0
    %148 = vmatpush2.xpose.msra.mxu0 0.0
    %149 = vmatprep.subr.mxu0 0.0
    %150 = vmatpush2.xpose.msra.mxu0 0.0
    %151 = vmatprep.subr.mxu0 0.0
    %152 = vmatpush2.xpose.msra.mxu0 0.0
    %153 = vmatprep.subr.mxu0 0.0
    %154 = vmatpush2.xpose.msra.mxu0 0.0
    %155 = vmatprep.subr.mxu0 0.0
    %156 = vmatpush2.xpose.msra.mxu0 0.0
    %157 = vmatprep.subr.mxu0 0.0
    %158 = vmatpush2.xpose.msra.mxu0 0.0
    %159 = vmatprep.subr.mxu0 0.0
    %160 = vmatpush2.xpose.msra.mxu0 0.0
    %161 = vmatprep.subr.mxu0 0.0
    %162 = vmatpush2.xpose.msra.mxu0 0.0
    %163 = vmatprep.subr.mxu0 0.0
    %164 = vmatpush2.xpose.msra.mxu0 0.0
    %165 = vmatprep.subr.mxu0 0.0
    %166 = vmatpush2.xpose.msra.mxu0 0.0
    %167 = vmatprep.mubr.f32.mxu0 0.0
    %168 = vmatmul.mubr.f32.gmra.mxu0 %v102
    %v169 = vpop.f32.mrf.mxu0
    %v170 = vadd.f32 0.0, %v169
    %v171 = vpop.f32.mrf.mxu0
    %172 = vdwg.mxu0
    %v173 = vld [vmem:[#allocation2] sm:$0x3]
    %v174 = vld [vmem:[%s74] sm:$0x3]
    %v175 = vld [vmem:[%s79] sm:$0x1]
    %v177 = vlaneseq
    %v178 = vshrl.u32 %v177, 7
    %v179 = vsub.s32 0, %v178
    %v180 = vrot.slane %v175, %v179
    %v182 = vmul.f32 %v174, %v180
    %v183 = vmul.f32 %v182, %v170
    %v184 = vadd.f32 %v173, %v183
    %185 = vst [vmem:[#allocation2] sm:$0x3] %v184
    // Predicated region
    $region30: #{tpu_custom_call.1} parent=1 // pred_check
      %p186 = pneg %p81
    $region31: #{tpu_custom_call.1} parent=1 // pred_check_branch
      %188 = sbr.rel (%p186) target = $region33
    $region32: #{tpu_custom_call.1} parent=1 // pred_region
      %v189 = vld [vmem:[#allocation2] sm:$0x3]
      %vm190 = vcmask 1041408
      %v191 = vsel %vm190, %v189, 0.0
      %192 = vadd.xlane.f32.xlu0 %v191
      %v193 = vpop.xlane.xlu0 %192
      %v194 = vrot.slane %v193, 4
      %v195 = vadd.f32 %v193, %v194
      %v196 = vrot.slane %v195, 2
      %v197 = vadd.f32 %v195, %v196
      %v198 = vrot.slane %v197, 1
      %v199 = vadd.f32 %v197, %v198
      %s200 = vtos %v199
      %s201 = smul.f32 %s200, 0.03125
      %v202 = vstv %s201
      %v203 = vadd.f32 %v202, 0.0
      %204 = vst [vmem:[#allocation8] sm:$0xff] %v203
    $region33: #{tpu_custom_call.1} parent=1 // pred_fallthru
      _
    // Predicated region
    $region34: #{tpu_custom_call.1} parent=1 // pred_check
      _
    $region35: #{tpu_custom_call.1} parent=1 // pred_check_branch
      %206 = sbr.rel (0) target = $region37
    $region36: #{tpu_custom_call.1} parent=1 // pred_region
      %s208 = ssub.s32 128, 128
      %209 = vsyncadd [#allocation5], %s208
      %s211 = sshll.u32 [#allocation8], 4
      %s212 = int_to_ptr.vmem [resolvable:$true] %s211
      %214 = dma.vmem_to_hbm [thread:$0]  %s212, 128, %s4, [#allocation5]
    $region37: #{tpu_custom_call.1} parent=1 // pred_fallthru
      _
    // Predicated region
    $region38: #{tpu_custom_call.1} parent=1 // pred_check
      _
    $region39: #{tpu_custom_call.1} parent=1 // pred_check_branch
      %216 = sbr.rel (0) target = $region41
    $region40: #{tpu_custom_call.1} parent=1 // pred_region
      %217 = dma.done [#allocation5], 128
    $region41: #{tpu_custom_call.1} parent=1 // pred_fallthru
      _
    %218 = vsyncpa [#allocation4], 1
    %219 = vsyncpa [#allocation7], 1
    %220 = vsyncpa [#allocation5], 1

</llo_original>
